<compile_context>
chip_gen: v7x
topology: tpu7x:2x2x1
jax: 0.10.0
libtpu: 0.0.40
codegen_flags: <defaults>
</compile_context>

<pallas_src>
import jax
import jax.numpy as jnp
from jax.experimental import pallas as pl
from jax.experimental.pallas import tpu as pltpu
import numpy as np

BN_EPS = 1e-5  # nn.BatchNorm1d default


# --------------------------------------------------------------------------- #
# Kernels
# --------------------------------------------------------------------------- #
def _fc(x_f32, w_ref, b_ref):
    """Linear layer: cast activation to the weight dtype (bf16 or f32) for the MXU,
    accumulate in f32, add the f32 bias."""
    return jnp.dot(x_f32.astype(w_ref.dtype), w_ref[...],
                   preferred_element_type=jnp.float32) + b_ref[...]


def _batchnorm_train(x):
    """Train-mode BatchNorm1d statistics over the batch axis, computed on the MXU.

    sum(x) and sum(x*x) are obtained as ones[1,B] @ x and ones[1,B] @ (x*x), keeping
    the reduction off the XLU/VPU.  Stats stay in f32.  The E[x^2]-mean^2 form is safe
    here (ReLU'd f32 activations of modest magnitude); clamp guards tiny negatives.
    """
    b = x.shape[0]
    ones_row = jnp.ones((1, b), jnp.float32)
    inv_b = jnp.float32(1.0 / b)
    s1 = jnp.dot(ones_row, x, preferred_element_type=jnp.float32)
    s2 = jnp.dot(ones_row, x * x, preferred_element_type=jnp.float32)
    mean = s1 * inv_b
    var = jnp.maximum(s2 * inv_b - mean * mean, 0.0)
    return (x - mean) * jax.lax.rsqrt(var + BN_EPS)


def actor_kernel_bn(state_ref,
                    w1_ref, b1_ref,
                    w2_ref, b2_ref,
                    w3_ref, b3_ref,
                    gamma_ref, beta_ref,
                    out_ref):
    x = jnp.maximum(_fc(state_ref[...], w1_ref, b1_ref), 0.0)        # fc1 + relu
    x = _batchnorm_train(x) * gamma_ref[...] + beta_ref[...]          # bn (train mode)
    x = jnp.maximum(_fc(x, w2_ref, b2_ref), 0.0)                      # fc2 + relu
    out_ref[...] = jnp.tanh(_fc(x, w3_ref, b3_ref))                   # fc3 + tanh


def actor_kernel_nobn(state_ref,
                      w1_ref, b1_ref,
                      w2_ref, b2_ref,
                      w3_ref, b3_ref,
                      out_ref):
    x = jnp.maximum(_fc(state_ref[...], w1_ref, b1_ref), 0.0)
    x = jnp.maximum(_fc(x, w2_ref, b2_ref), 0.0)
    out_ref[...] = jnp.tanh(_fc(x, w3_ref, b3_ref))


# --------------------------------------------------------------------------- #
# Wrapper
# --------------------------------------------------------------------------- #
def actor_forward(state, prepared, action_size, *, normalize_batch=True):
    """state: [B, state_size] f32.  prepared: output of prepare_params()."""
    B = state.shape[0]
    out_pad = prepared["w3"].shape[1]  # lane-dense padded output width (>=128)

    vmem = lambda: pl.BlockSpec(memory_space=pltpu.MemorySpace.VMEM)

    if normalize_batch:
        kernel = actor_kernel_bn
        args = (state,
                prepared["w1"], prepared["b1"],
                prepared["w2"], prepared["b2"],
                prepared["w3"], prepared["b3"],
                prepared["gamma"], prepared["beta"])
    else:
        kernel = actor_kernel_nobn
        args = (state,
                prepared["w1"], prepared["b1"],
                prepared["w2"], prepared["b2"],
                prepared["w3"], prepared["b3"])

    out_padded = pl.pallas_call(
        kernel,
        out_shape=jax.ShapeDtypeStruct((B, out_pad), jnp.float32),
        in_specs=[vmem() for _ in args],
        out_specs=vmem(),
    )(*args)
    return out_padded[:, :action_size]


# --------------------------------------------------------------------------- #
# Parameter init / preparation
# --------------------------------------------------------------------------- #
def init_actor_params(key, state_size, action_size, fc1_units=128, fc2_units=64):
    """Deterministic init mirroring Actor._initialize_weights().

    Note: hidden_init() in the reference uses weight.size()[0] == out_features as
    'fan_in' — replicated exactly.  Weights are stored [in, out] (transposed vs.
    PyTorch nn.Linear) so the kernel does plain `x @ W + b`.
    """
    k = jax.random.split(key, 6)

    lim1 = 1.0 / np.sqrt(fc1_units)   # hidden_init(fc1)
    lim2 = 1.0 / np.sqrt(fc2_units)   # hidden_init(fc2)
    lim3 = 3e-3

    # nn.Linear default bias init: U(-1/sqrt(in_features), +)
    blim1 = 1.0 / np.sqrt(state_size)
    blim2 = 1.0 / np.sqrt(fc1_units)
    blim3 = 1.0 / np.sqrt(fc2_units)

    u = lambda kk, shape, lim: jax.random.uniform(
        kk, shape, jnp.float32, minval=-lim, maxval=lim)

    return {
        "w1": u(k[0], (state_size, fc1_units), lim1),
        "b1": u(k[1], (1, fc1_units), blim1),
        "w2": u(k[2], (fc1_units, fc2_units), lim2),
        "b2": u(k[3], (1, fc2_units), blim2),
        "w3": u(k[4], (fc2_units, action_size), lim3),
        "b3": u(k[5], (1, action_size), blim3),
        # BatchNorm1d affine params (PyTorch default: weight=1, bias=0)
        "gamma": jnp.ones((1, fc1_units), jnp.float32),
        "beta": jnp.zeros((1, fc1_units), jnp.float32),
    }


def prepare_params(params, *, weight_dtype=jnp.bfloat16, lane=128):
    """One-time param prep (do this once, reuse across calls):
      * cast matmul weights to `weight_dtype` (bf16 halves weight DMA, native MXU rate);
      * zero-pad fc3 output columns up to a multiple of 128 lanes for a lane-dense
        (unmasked) output store.  Biases / BN params stay f32.
    """
    action_size = params["w3"].shape[1]
    fc2_units = params["w3"].shape[0]
    out_pad = max(lane, ((action_size + lane - 1) // lane) * lane)

    w3_p = jnp.zeros((fc2_units, out_pad), jnp.float32).at[:, :action_size].set(params["w3"])
    b3_p = jnp.zeros((1, out_pad), jnp.float32).at[:, :action_size].set(params["b3"])

    return {
        "w1": params["w1"].astype(weight_dtype),
        "b1": params["b1"],
        "w2": params["w2"].astype(weight_dtype),
        "b2": params["b2"],
        "w3": w3_p.astype(weight_dtype),
        "b3": b3_p,
        "gamma": params["gamma"],
        "beta": params["beta"],
    }


# --------------------------------------------------------------------------- #
# Pure-JAX reference (same dtype strategy as the kernel for a tight check)
# --------------------------------------------------------------------------- #
def actor_reference(state, prepared, action_size, *, normalize_batch=True):
    cdt = prepared["w1"].dtype
    dot = lambda a, w: jnp.dot(a.astype(cdt), w, preferred_element_type=jnp.float32)

    x = jnp.maximum(dot(state, prepared["w1"]) + prepared["b1"], 0.0)
    if normalize_batch:
        mean = jnp.mean(x, axis=0, keepdims=True)
        var = jnp.mean((x - mean) ** 2, axis=0, keepdims=True)
        x = (x - mean) / jnp.sqrt(var + BN_EPS) * prepared["gamma"] + prepared["beta"]
    x = jnp.maximum(dot(x, prepared["w2"]) + prepared["b2"], 0.0)
    out = jnp.tanh(dot(x, prepared["w3"]) + prepared["b3"])
    return out[:, :action_size]


# --------------------------------------------------------------------------- #
if __name__ == "__main__":
    key = jax.random.PRNGKey(0)
    kp, kx = jax.random.split(key)

    # Small, module-consistent shapes (sublane-aligned batch; default hidden widths).
    batch = 16
    state_size = 8
    action_size = 4

    params = init_actor_params(kp, state_size, action_size, fc1_units=128, fc2_units=64)
    state = jax.random.normal(kx, (batch, state_size), jnp.float32)

    # 1) bf16-weight fast path (v5e/v6e/v7x MXU-friendly), BatchNorm on.
    p_bf16 = prepare_params(params, weight_dtype=jnp.bfloat16)
    out_bf16 = jax.block_until_ready(
        actor_forward(state, p_bf16, action_size, normalize_batch=True))
    ref_bf16 = actor_reference(state, p_bf16, action_size, normalize_batch=True)
    np.testing.assert_allclose(np.asarray(out_bf16), np.asarray(ref_bf16),
                               rtol=2e-2, atol=2e-2)

    # 2) f32 path — exact train-mode module semantics, BatchNorm on.
    p_f32 = prepare_params(params, weight_dtype=jnp.float32)
    out_f32 = jax.block_until_ready(
        actor_forward(state, p_f32, action_size, normalize_batch=True))
    ref_f32 = actor_reference(state, p_f32, action_size, normalize_batch=True)
    np.testing.assert_allclose(np.asarray(out_f32), np.asarray(ref_f32),
                               rtol=1e-4, atol=1e-4)

    # 3) normalize_batch_first_layers=False path.
    out_nb = jax.block_until_ready(
        actor_forward(state, p_f32, action_size, normalize_batch=False))
    ref_nb = actor_reference(state, p_f32, action_size, normalize_batch=False)
    np.testing.assert_allclose(np.asarray(out_nb), np.asarray(ref_nb),
                               rtol=1e-4, atol=1e-4)

    print("KERNEL_OK")
</pallas_src>

<mosaic_0001>
module attributes {stable_mosaic.version = 11 : i64} {
  func.func @actor_kernel_bn(%arg0: memref<16x8xf32, #tpu.memory_space<vmem>>, %arg1: memref<8x128xbf16, #tpu.memory_space<vmem>>, %arg2: memref<1x128xf32, #tpu.memory_space<vmem>>, %arg3: memref<128x64xbf16, #tpu.memory_space<vmem>>, %arg4: memref<1x64xf32, #tpu.memory_space<vmem>>, %arg5: memref<64x128xbf16, #tpu.memory_space<vmem>>, %arg6: memref<1x128xf32, #tpu.memory_space<vmem>>, %arg7: memref<1x128xf32, #tpu.memory_space<vmem>>, %arg8: memref<1x128xf32, #tpu.memory_space<vmem>>, %arg9: memref<16x128xf32, #tpu.memory_space<vmem>>) attributes {dimension_semantics = [], scalar_prefetch = 0 : i64, scratch_operands = 0 : i64, tpu.core_type = #tpu.core_type<tc>} {
    %c0 = arith.constant 0 : index
    %c0_0 = arith.constant 0 : index
    %0 = vector.load %arg0[%c0, %c0_0] : memref<16x8xf32, #tpu.memory_space<vmem>>, vector<16x8xf32>
    %1 = arith.truncf %0 : vector<16x8xf32> to vector<16x8xbf16>
    %c0_1 = arith.constant 0 : index
    %c0_2 = arith.constant 0 : index
    %2 = vector.load %arg1[%c0_1, %c0_2] : memref<8x128xbf16, #tpu.memory_space<vmem>>, vector<8x128xbf16>
    %cst = arith.constant dense<0.000000e+00> : vector<16x128xf32>
    %3 = tpu.matmul %1, %2, %cst {dimension_numbers = #tpu.dot_dimension_numbers<[1], [0], [0], [1], [0, 0, 1, 1], [], []>} : vector<16x8xbf16>, vector<8x128xbf16>, vector<16x128xf32> -> vector<16x128xf32>
    %c0_3 = arith.constant 0 : index
    %c0_4 = arith.constant 0 : index
    %4 = vector.load %arg2[%c0_3, %c0_4] : memref<1x128xf32, #tpu.memory_space<vmem>>, vector<1x128xf32>
    %5 = vector.broadcast %4 : vector<1x128xf32> to vector<16x128xf32>
    %6 = arith.addf %3, %5 : vector<16x128xf32>
    %cst_5 = arith.constant 0.000000e+00 : f32
    %7 = vector.broadcast %cst_5 : f32 to vector<16x128xf32>
    %8 = arith.maximumf %6, %7 : vector<16x128xf32>
    %cst_6 = arith.constant 1.000000e+00 : f32
    %9 = vector.broadcast %cst_6 : f32 to vector<1x16xf32>
    %cst_7 = arith.constant dense<0.000000e+00> : vector<1x128xf32>
    %10 = tpu.matmul %9, %8, %cst_7 {dimension_numbers = #tpu.dot_dimension_numbers<[1], [0], [0], [1], [0, 0, 1, 1], [], []>} : vector<1x16xf32>, vector<16x128xf32>, vector<1x128xf32> -> vector<1x128xf32>
    %11 = arith.mulf %8, %8 : vector<16x128xf32>
    %cst_8 = arith.constant dense<0.000000e+00> : vector<1x128xf32>
    %12 = tpu.matmul %9, %11, %cst_8 {dimension_numbers = #tpu.dot_dimension_numbers<[1], [0], [0], [1], [0, 0, 1, 1], [], []>} : vector<1x16xf32>, vector<16x128xf32>, vector<1x128xf32> -> vector<1x128xf32>
    %cst_9 = arith.constant 6.250000e-02 : f32
    %13 = vector.broadcast %cst_9 : f32 to vector<1x128xf32>
    %14 = arith.mulf %10, %13 : vector<1x128xf32>
    %cst_10 = arith.constant 6.250000e-02 : f32
    %15 = vector.broadcast %cst_10 : f32 to vector<1x128xf32>
    %16 = arith.mulf %12, %15 : vector<1x128xf32>
    %17 = arith.mulf %14, %14 : vector<1x128xf32>
    %18 = arith.subf %16, %17 : vector<1x128xf32>
    %cst_11 = arith.constant 0.000000e+00 : f32
    %19 = vector.broadcast %cst_11 : f32 to vector<1x128xf32>
    %20 = arith.maximumf %18, %19 : vector<1x128xf32>
    %21 = vector.broadcast %14 : vector<1x128xf32> to vector<16x128xf32>
    %22 = arith.subf %8, %21 : vector<16x128xf32>
    %cst_12 = arith.constant 9.99999974E-6 : f32
    %23 = vector.broadcast %cst_12 : f32 to vector<1x128xf32>
    %24 = arith.addf %20, %23 : vector<1x128xf32>
    %25 = math.rsqrt %24 : vector<1x128xf32>
    %26 = vector.broadcast %25 : vector<1x128xf32> to vector<16x128xf32>
    %27 = arith.mulf %22, %26 : vector<16x128xf32>
    %c0_13 = arith.constant 0 : index
    %c0_14 = arith.constant 0 : index
    %28 = vector.load %arg7[%c0_13, %c0_14] : memref<1x128xf32, #tpu.memory_space<vmem>>, vector<1x128xf32>
    %29 = vector.broadcast %28 : vector<1x128xf32> to vector<16x128xf32>
    %30 = arith.mulf %27, %29 : vector<16x128xf32>
    %c0_15 = arith.constant 0 : index
    %c0_16 = arith.constant 0 : index
    %31 = vector.load %arg8[%c0_15, %c0_16] : memref<1x128xf32, #tpu.memory_space<vmem>>, vector<1x128xf32>
    %32 = vector.broadcast %31 : vector<1x128xf32> to vector<16x128xf32>
    %33 = arith.addf %30, %32 : vector<16x128xf32>
    %34 = arith.truncf %33 : vector<16x128xf32> to vector<16x128xbf16>
    %c0_17 = arith.constant 0 : index
    %c0_18 = arith.constant 0 : index
    %35 = vector.load %arg3[%c0_17, %c0_18] : memref<128x64xbf16, #tpu.memory_space<vmem>>, vector<128x64xbf16>
    %cst_19 = arith.constant dense<0.000000e+00> : vector<16x64xf32>
    %36 = tpu.matmul %34, %35, %cst_19 {dimension_numbers = #tpu.dot_dimension_numbers<[1], [0], [0], [1], [0, 0, 1, 1], [], []>} : vector<16x128xbf16>, vector<128x64xbf16>, vector<16x64xf32> -> vector<16x64xf32>
    %c0_20 = arith.constant 0 : index
    %c0_21 = arith.constant 0 : index
    %37 = vector.load %arg4[%c0_20, %c0_21] : memref<1x64xf32, #tpu.memory_space<vmem>>, vector<1x64xf32>
    %38 = vector.broadcast %37 : vector<1x64xf32> to vector<16x64xf32>
    %39 = arith.addf %36, %38 : vector<16x64xf32>
    %cst_22 = arith.constant 0.000000e+00 : f32
    %40 = vector.broadcast %cst_22 : f32 to vector<16x64xf32>
    %41 = arith.maximumf %39, %40 : vector<16x64xf32>
    %42 = arith.truncf %41 : vector<16x64xf32> to vector<16x64xbf16>
    %c0_23 = arith.constant 0 : index
    %c0_24 = arith.constant 0 : index
    %43 = vector.load %arg5[%c0_23, %c0_24] : memref<64x128xbf16, #tpu.memory_space<vmem>>, vector<64x128xbf16>
    %cst_25 = arith.constant dense<0.000000e+00> : vector<16x128xf32>
    %44 = tpu.matmul %42, %43, %cst_25 {dimension_numbers = #tpu.dot_dimension_numbers<[1], [0], [0], [1], [0, 0, 1, 1], [], []>} : vector<16x64xbf16>, vector<64x128xbf16>, vector<16x128xf32> -> vector<16x128xf32>
    %c0_26 = arith.constant 0 : index
    %c0_27 = arith.constant 0 : index
    %45 = vector.load %arg6[%c0_26, %c0_27] : memref<1x128xf32, #tpu.memory_space<vmem>>, vector<1x128xf32>
    %46 = vector.broadcast %45 : vector<1x128xf32> to vector<16x128xf32>
    %47 = arith.addf %44, %46 : vector<16x128xf32>
    %48 = math.tanh %47 : vector<16x128xf32>
    %c0_28 = arith.constant 0 : index
    %c0_29 = arith.constant 0 : index
    %49 = vector.load %arg9[%c0_28, %c0_29] : memref<16x128xf32, #tpu.memory_space<vmem>>, vector<16x128xf32>
    tpu.vector_store %arg9[%c0_28, %c0_29], %48 {strides = array<i32>} : memref<16x128xf32, #tpu.memory_space<vmem>>, vector<16x128xf32>,
    return
  }
}

</mosaic_0001>

<llo_original>
// kernel: tpu_custom_call.1
$region0: #{tpu_custom_call.1}
  #allocation0 [shape = 'u32[]', space=smem, size = 0x4, offset = 0x4, fixed_abs, tag = 'smem constant byte address 0x4 - core index']
  #allocation1 [shape = 'u32[144,128]{1,0:T(1,128)}', space=vmem, size = 0x12000, scoped, tag = 'internal scratch']
  %s0 = inlined_call_operand.vmem [shape: f32[16,8], index: 0, kind: input, shape index: {}]
  %s1 = inlined_call_operand.vmem [shape: bf16[8,128], index: 1, kind: input, shape index: {}]
  %s2 = inlined_call_operand.vmem [shape: f32[1,128], index: 2, kind: input, shape index: {}]
  %s3 = inlined_call_operand.vmem [shape: bf16[128,64], index: 3, kind: input, shape index: {}]
  %s4 = inlined_call_operand.vmem [shape: f32[1,64], index: 4, kind: input, shape index: {}]
  %s5 = inlined_call_operand.vmem [shape: bf16[64,128], index: 5, kind: input, shape index: {}]
  %s6 = inlined_call_operand.vmem [shape: f32[1,128], index: 6, kind: input, shape index: {}]
  %s7 = inlined_call_operand.vmem [shape: f32[1,128], index: 7, kind: input, shape index: {}]
  %s8 = inlined_call_operand.vmem [shape: f32[1,128], index: 8, kind: input, shape index: {}]
  %s9 = inlined_call_operand.hbm [shape: f32[16,128], index: 9, kind: output, shape index: {}]
  %s10 = sld [smem:[#allocation0]]
  $region46: #{tpu_custom_call.1} parent=0
    _
  %s12 = ssub.s32 1, %s10
  %s13 = scalar_select 0, %s12, %s10
  $region1: #{tpu_custom_call.1} parent=0
    #allocation2 [shape = 'u8[8192]{0}', space=vmem, size = 0x2000, scoped, tag = 'output window, operand 0, single buffered']
    #allocation3 [shape = 's32[1]{0}', space=sflag, size = 0x4, scoped, tag = 'scoped memory for tpu_custom_call.1']
    %14 = vsyncpa [#allocation3], 0
    // Predicated region
    $region2: #{tpu_custom_call.1} parent=1 // pred_check
      _
    $region3: #{tpu_custom_call.1} parent=1 // pred_check_branch
      %16 = sbr.rel (0) target = $region5
    $region4: #{tpu_custom_call.1} parent=1 // pred_region
      _
    $region5: #{tpu_custom_call.1} parent=1 // pred_fallthru
      _
    // Predicated region
    $region6: #{tpu_custom_call.1} parent=1 // pred_check
      _
    $region7: #{tpu_custom_call.1} parent=1 // pred_check_branch
      %18 = sbr.rel (0) target = $region9
    $region8: #{tpu_custom_call.1} parent=1 // pred_region
      _
    $region9: #{tpu_custom_call.1} parent=1 // pred_fallthru
      _
    // Predicated region
    $region10: #{tpu_custom_call.1} parent=1 // pred_check
      _
    $region11: #{tpu_custom_call.1} parent=1 // pred_check_branch
      %20 = sbr.rel (0) target = $region13
    $region12: #{tpu_custom_call.1} parent=1 // pred_region
      _
    $region13: #{tpu_custom_call.1} parent=1 // pred_fallthru
      _
    // Predicated region
    $region14: #{tpu_custom_call.1} parent=1 // pred_check
      _
    $region15: #{tpu_custom_call.1} parent=1 // pred_check_branch
      %22 = sbr.rel (0) target = $region17
    $region16: #{tpu_custom_call.1} parent=1 // pred_region
      _
    $region17: #{tpu_custom_call.1} parent=1 // pred_fallthru
      _
    // Predicated region
    $region18: #{tpu_custom_call.1} parent=1 // pred_check
      _
    $region19: #{tpu_custom_call.1} parent=1 // pred_check_branch
      %24 = sbr.rel (0) target = $region21
    $region20: #{tpu_custom_call.1} parent=1 // pred_region
      _
    $region21: #{tpu_custom_call.1} parent=1 // pred_fallthru
      _
    // Predicated region
    $region22: #{tpu_custom_call.1} parent=1 // pred_check
      _
    $region23: #{tpu_custom_call.1} parent=1 // pred_check_branch
      %26 = sbr.rel (0) target = $region25
    $region24: #{tpu_custom_call.1} parent=1 // pred_region
      _
    $region25: #{tpu_custom_call.1} parent=1 // pred_fallthru
      _
    // Predicated region
    $region26: #{tpu_custom_call.1} parent=1 // pred_check
      _
    $region27: #{tpu_custom_call.1} parent=1 // pred_check_branch
      %28 = sbr.rel (0) target = $region29
    $region28: #{tpu_custom_call.1} parent=1 // pred_region
      _
    $region29: #{tpu_custom_call.1} parent=1 // pred_fallthru
      _
    // Predicated region
    $region30: #{tpu_custom_call.1} parent=1 // pred_check
      _
    $region31: #{tpu_custom_call.1} parent=1 // pred_check_branch
      %30 = sbr.rel (0) target = $region33
    $region32: #{tpu_custom_call.1} parent=1 // pred_region
      _
    $region33: #{tpu_custom_call.1} parent=1 // pred_fallthru
      _
    // Predicated region
    $region34: #{tpu_custom_call.1} parent=1 // pred_check
      _
    $region35: #{tpu_custom_call.1} parent=1 // pred_check_branch
      %32 = sbr.rel (0) target = $region37
    $region36: #{tpu_custom_call.1} parent=1 // pred_region
      _
    $region37: #{tpu_custom_call.1} parent=1 // pred_fallthru
      _
    %v34 = vld [vmem:[%s0] sm:$0xff]
    %v35 = vld [vmem:[%s0 + $0x8] sm:$0xff]
    %v36 = vpack.c.bf16 %v35, %v34
    %v37 = vld [vmem:[%s1] sm:$0xf]
    %v38 = vld [vmem:[%s2] sm:$0x1]
    %v40 = vlaneseq
    %v41 = vshrl.u32 %v40, 7
    %v42 = vsub.s32 0, %v41
    %v43 = vrot.slane %v38, %v42
    %vm45 = vcmask 64512
    %v47 = vsel %vm45, %v36, 0
    %vm49 = vcmask 1043456
    %v51 = vsel %vm49, %v37, 0
    %53 = vmatprep.subr.bf16.mxu0 0
    %54 = vmatpush1.bf16.msra.mxu0 %v51
    %55 = vmatprep.subr.bf16.mxu0 0
    %56 = vmatpush1.bf16.msra.mxu0 0
    %57 = vmatprep.subr.bf16.mxu0 0
    %58 = vmatpush1.bf16.msra.mxu0 0
    %59 = vmatprep.subr.bf16.mxu0 0
    %60 = vmatpush1.bf16.msra.mxu0 0
    %61 = vmatprep.subr.bf16.mxu0 0
    %62 = vmatpush1.bf16.msra.mxu0 0
    %63 = vmatprep.subr.bf16.mxu0 0
    %64 = vmatpush1.bf16.msra.mxu0 0
    %65 = vmatprep.subr.bf16.mxu0 0
    %66 = vmatpush1.bf16.msra.mxu0 0
    %67 = vmatprep.subr.bf16.mxu0 0
    %68 = vmatpush1.bf16.msra.mxu0 0
    %69 = vmatprep.subr.bf16.mxu0 0
    %70 = vmatpush1.bf16.msra.mxu0 0
    %71 = vmatprep.subr.bf16.mxu0 0
    %72 = vmatpush1.bf16.msra.mxu0 0
    %73 = vmatprep.subr.bf16.mxu0 0
    %74 = vmatpush1.bf16.msra.mxu0 0
    %75 = vmatprep.subr.bf16.mxu0 0
    %76 = vmatpush1.bf16.msra.mxu0 0
    %77 = vmatprep.subr.bf16.mxu0 0
    %78 = vmatpush1.bf16.msra.mxu0 0
    %79 = vmatprep.subr.bf16.mxu0 0
    %80 = vmatpush1.bf16.msra.mxu0 0
    %81 = vmatprep.subr.bf16.mxu0 0
    %82 = vmatpush1.bf16.msra.mxu0 0
    %83 = vmatprep.subr.bf16.mxu0 0
    %84 = vmatpush1.bf16.msra.mxu0 0
    %85 = vmatprep.mubr.bf16.mxu0 0
    %86 = vmatmul.mubr.bf16.gmra.mrb[0].mxu0 %v47
    %v87 = vpop.f32.mrb[0].mxu0
    %v88 = vadd.f32 %v43, %v87
    %v89 = vpop.f32.mrb[0].mxu0
    %v90 = vpop.f32.mrb[0].mxu0
    %v91 = vadd.f32 %v43, %v90
    %v92 = vpop.f32.mrb[0].mxu0
    %93 = vdwg.mxu0
    %v94 = vmax.f32 %v88, 0.0
    %v95 = vmax.f32 %v91, 0.0
    %vm96 = vcmask 130048
    %v98 = vsel %vm96, 1.0, 0
    %100 = vmatprep.subr.mxu0 0.0
    %101 = vmatpush1.msra.mxu0 %v94
    %102 = vmatprep.subr.mxu0 0.0
    %103 = vmatpush1.msra.mxu0 %v95
    %104 = vmatprep.subr.mxu0 0.0
    %105 = vmatpush1.msra.mxu0 0.0
    %106 = vmatprep.subr.mxu0 0.0
    %107 = vmatpush1.msra.mxu0 0.0
    %108 = vmatprep.subr.mxu0 0.0
    %109 = vmatpush1.msra.mxu0 0.0
    %110 = vmatprep.subr.mxu0 0.0
    %111 = vmatpush1.msra.mxu0 0.0
    %112 = vmatprep.subr.mxu0 0.0
    %113 = vmatpush1.msra.mxu0 0.0
    %114 = vmatprep.subr.mxu0 0.0
    %115 = vmatpush1.msra.mxu0 0.0
    %116 = vmatprep.subr.mxu0 0.0
    %117 = vmatpush1.msra.mxu0 0.0
    %118 = vmatprep.subr.mxu0 0.0
    %119 = vmatpush1.msra.mxu0 0.0
    %120 = vmatprep.subr.mxu0 0.0
    %121 = vmatpush1.msra.mxu0 0.0
    %122 = vmatprep.subr.mxu0 0.0
    %123 = vmatpush1.msra.mxu0 0.0
    %124 = vmatprep.subr.mxu0 0.0
    %125 = vmatpush1.msra.mxu0 0.0
    %126 = vmatprep.subr.mxu0 0.0
    %127 = vmatpush1.msra.mxu0 0.0
    %128 = vmatprep.subr.mxu0 0.0
    %129 = vmatpush1.msra.mxu0 0.0
    %130 = vmatprep.subr.mxu0 0.0
    %131 = vmatpush1.msra.mxu0 0.0
    %132 = vmatprep.subr.mxu0 0.0
    %133 = vmatpush1.msra.mxu0 0.0
    %134 = vmatprep.subr.mxu0 0.0
    %135 = vmatpush1.msra.mxu0 0.0
    %136 = vmatprep.subr.mxu0 0.0
    %137 = vmatpush1.msra.mxu0 0.0
    %138 = vmatprep.subr.mxu0 0.0
    %139 = vmatpush1.msra.mxu0 0.0
    %140 = vmatprep.subr.mxu0 0.0
    %141 = vmatpush1.msra.mxu0 0.0
    %142 = vmatprep.subr.mxu0 0.0
    %143 = vmatpush1.msra.mxu0 0.0
    %144 = vmatprep.subr.mxu0 0.0
    %145 = vmatpush1.msra.mxu0 0.0
    %146 = vmatprep.subr.mxu0 0.0
    %147 = vmatpush1.msra.mxu0 0.0
    %148 = vmatprep.subr.mxu0 0.0
    %149 = vmatpush1.msra.mxu0 0.0
    %150 = vmatprep.subr.mxu0 0.0
    %151 = vmatpush1.msra.mxu0 0.0
    %152 = vmatprep.subr.mxu0 0.0
    %153 = vmatpush1.msra.mxu0 0.0
    %154 = vmatprep.subr.mxu0 0.0
    %155 = vmatpush1.msra.mxu0 0.0
    %156 = vmatprep.subr.mxu0 0.0
    %157 = vmatpush1.msra.mxu0 0.0
    %158 = vmatprep.subr.mxu0 0.0
    %159 = vmatpush1.msra.mxu0 0.0
    %160 = vmatprep.subr.mxu0 0.0
    %161 = vmatpush1.msra.mxu0 0.0
    %162 = vmatprep.subr.mxu0 0.0
    %163 = vmatpush1.msra.mxu0 0.0
    %164 = vmatprep.mubr.f32.mxu0 0.0
    %165 = vmatmul.mubr.f32.gmra.mrb[0].mxu0 %v98
    %v166 = vpop.f32.mrb[0].mxu0
    %v167 = vadd.f32 0.0, %v166
    %v168 = vpop.f32.mrb[0].mxu0
    %169 = vdwg.mxu0
    %v170 = vmul.f32 %v94, %v94
    %v171 = vmul.f32 %v95, %v95
    %172 = vmatprep.subr.mxu0 0.0
    %173 = vmatpush1.msra.mxu0 %v170
    %174 = vmatprep.subr.mxu0 0.0
    %175 = vmatpush1.msra.mxu0 %v171
    %176 = vmatprep.subr.mxu0 0.0
    %177 = vmatpush1.msra.mxu0 0.0
    %178 = vmatprep.subr.mxu0 0.0
    %179 = vmatpush1.msra.mxu0 0.0
    %180 = vmatprep.subr.mxu0 0.0
    %181 = vmatpush1.msra.mxu0 0.0
    %182 = vmatprep.subr.mxu0 0.0
    %183 = vmatpush1.msra.mxu0 0.0
    %184 = vmatprep.subr.mxu0 0.0
    %185 = vmatpush1.msra.mxu0 0.0
    %186 = vmatprep.subr.mxu0 0.0
    %187 = vmatpush1.msra.mxu0 0.0
    %188 = vmatprep.subr.mxu0 0.0
    %189 = vmatpush1.msra.mxu0 0.0
    %190 = vmatprep.subr.mxu0 0.0
    %191 = vmatpush1.msra.mxu0 0.0
    %192 = vmatprep.subr.mxu0 0.0
    %193 = vmatpush1.msra.mxu0 0.0
    %194 = vmatprep.subr.mxu0 0.0
    %195 = vmatpush1.msra.mxu0 0.0
    %196 = vmatprep.subr.mxu0 0.0
    %197 = vmatpush1.msra.mxu0 0.0
    %198 = vmatprep.subr.mxu0 0.0
    %199 = vmatpush1.msra.mxu0 0.0
    %200 = vmatprep.subr.mxu0 0.0
    %201 = vmatpush1.msra.mxu0 0.0
    %202 = vmatprep.subr.mxu0 0.0
    %203 = vmatpush1.msra.mxu0 0.0
    %204 = vmatprep.subr.mxu0 0.0
    %205 = vmatpush1.msra.mxu0 0.0
    %206 = vmatprep.subr.mxu0 0.0
    %207 = vmatpush1.msra.mxu0 0.0
    %208 = vmatprep.subr.mxu0 0.0
    %209 = vmatpush1.msra.mxu0 0.0
    %210 = vmatprep.subr.mxu0 0.0
    %211 = vmatpush1.msra.mxu0 0.0
    %212 = vmatprep.subr.mxu0 0.0
    %213 = vmatpush1.msra.mxu0 0.0
    %214 = vmatprep.subr.mxu0 0.0
    %215 = vmatpush1.msra.mxu0 0.0
    %216 = vmatprep.subr.mxu0 0.0
    %217 = vmatpush1.msra.mxu0 0.0
    %218 = vmatprep.subr.mxu0 0.0
    %219 = vmatpush1.msra.mxu0 0.0
    %220 = vmatprep.subr.mxu0 0.0
    %221 = vmatpush1.msra.mxu0 0.0
    %222 = vmatprep.subr.mxu0 0.0
    %223 = vmatpush1.msra.mxu0 0.0
    %224 = vmatprep.subr.mxu0 0.0
    %225 = vmatpush1.msra.mxu0 0.0
    %226 = vmatprep.subr.mxu0 0.0
    %227 = vmatpush1.msra.mxu0 0.0
    %228 = vmatprep.subr.mxu0 0.0
    %229 = vmatpush1.msra.mxu0 0.0
    %230 = vmatprep.subr.mxu0 0.0
    %231 = vmatpush1.msra.mxu0 0.0
    %232 = vmatprep.subr.mxu0 0.0
    %233 = vmatpush1.msra.mxu0 0.0
    %234 = vmatprep.subr.mxu0 0.0
    %235 = vmatpush1.msra.mxu0 0.0
    %236 = vmatprep.mubr.f32.mxu0 0.0
    %237 = vmatmul.mubr.f32.gmra.mrb[0].mxu0 %v98
    %v238 = vpop.f32.mrb[0].mxu0
    %v239 = vadd.f32 0.0, %v238
    %v240 = vpop.f32.mrb[0].mxu0
    %241 = vdwg.mxu0
    %v242 = vmul.f32 %v167, 0.0625
    %v243 = vmul.f32 %v239, 0.0625
    %v244 = vmul.f32 %v242, %v242
    %v245 = vsub.f32 %v243, %v244
    %v246 = vmax.f32 %v245, 0.0
    %v247 = vlaneseq
    %v248 = vshrl.u32 %v247, 7
    %v249 = vsub.s32 0, %v248
    %v250 = vrot.slane %v242, %v249
    %v251 = vsub.f32 %v94, %v250
    %v252 = vsub.f32 %v95, %v250
    %v253 = vadd.f32 %v246, 1e-05
    %v254 = vrsqrt.pop %v253
    %v255 = vlaneseq
    %v256 = vshrl.u32 %v255, 7
    %v257 = vsub.s32 0, %v256
    %v258 = vrot.slane %v254, %v257
    %v259 = vmul.f32 %v251, %v258
    %v260 = vmul.f32 %v252, %v258
    %v261 = vld [vmem:[%s7] sm:$0x1]
    %v263 = vlaneseq
    %v264 = vshrl.u32 %v263, 7
    %v265 = vsub.s32 0, %v264
    %v266 = vrot.slane %v261, %v265
    %v268 = vmul.f32 %v259, %v266
    %v269 = vmul.f32 %v260, %v266
    %v270 = vld [vmem:[%s8] sm:$0x1]
    %v272 = vlaneseq
    %v273 = vshrl.u32 %v272, 7
    %v274 = vsub.s32 0, %v273
    %v275 = vrot.slane %v270, %v274
    %v277 = vadd.f32 %v268, %v275
    %v278 = vadd.f32 %v269, %v275
    %v279 = vpack.c.bf16 %v278, %v277
    %v280 = vld [vmem:[%s3] sm:$0xf]
    %v281 = vld [vmem:[%s3 + $0x4] sm:$0xf]
    %v282 = vld [vmem:[%s3 + $0x8] sm:$0xf]
    %v283 = vld [vmem:[%s3 + $0xc] sm:$0xf]
    %v284 = vld [vmem:[%s3 + $0x10] sm:$0xf]
    %v285 = vld [vmem:[%s3 + $0x14] sm:$0xf]
    %v286 = vld [vmem:[%s3 + $0x18] sm:$0xf]
    %v287 = vld [vmem:[%s3 + $0x1c] sm:$0xf]
    %v288 = vld [vmem:[%s3 + $0x20] sm:$0xf]
    %v289 = vld [vmem:[%s3 + $0x24] sm:$0xf]
    %v290 = vld [vmem:[%s3 + $0x28] sm:$0xf]
    %v291 = vld [vmem:[%s3 + $0x2c] sm:$0xf]
    %v292 = vld [vmem:[%s3 + $0x30] sm:$0xf]
    %v293 = vld [vmem:[%s3 + $0x34] sm:$0xf]
    %v294 = vld [vmem:[%s3 + $0x38] sm:$0xf]
    %v295 = vld [vmem:[%s3 + $0x3c] sm:$0xf]
    %v296 = vld [vmem:[%s4] sm:$0x1]
    %v298 = vlaneseq
    %v299 = vshrl.u32 %v298, 7
    %v300 = vsub.s32 0, %v299
    %v301 = vrot.slane %v296, %v300
    %v319 = vunpack.c.l.b16 %v280
    %v320 = vunpack.c.l.b16 %v281
    %v321 = vunpack.c.l.b16 %v282
    %v322 = vunpack.c.l.b16 %v283
    %v323 = vunpack.c.l.b16 %v284
    %v324 = vunpack.c.l.b16 %v285
    %v325 = vunpack.c.l.b16 %v286
    %v326 = vunpack.c.l.b16 %v287
    %v327 = vunpack.c.l.b16 %v288
    %v328 = vunpack.c.l.b16 %v289
    %v329 = vunpack.c.l.b16 %v290
    %v330 = vunpack.c.l.b16 %v291
    %v331 = vunpack.c.l.b16 %v292
    %v332 = vunpack.c.l.b16 %v293
    %v333 = vunpack.c.l.b16 %v294
    %v334 = vunpack.c.l.b16 %v295
    %v335 = vpack.c.b16 %v320, %v319
    %v336 = vpack.c.b16 %v322, %v321
    %v337 = vpack.c.b16 %v324, %v323
    %v338 = vpack.c.b16 %v326, %v325
    %v339 = vpack.c.b16 %v328, %v327
    %v340 = vpack.c.b16 %v330, %v329
    %v341 = vpack.c.b16 %v332, %v331
    %v342 = vpack.c.b16 %v334, %v333
    %351 = vmatprep.subr.bf16.mxu0 0
    %352 = vmatpush1.bf16.msra.mxu0 %v335
    %353 = vmatprep.subr.bf16.mxu0 0
    %354 = vmatpush1.bf16.msra.mxu0 %v336
    %355 = vmatprep.subr.bf16.mxu0 0
    %356 = vmatpush1.bf16.msra.mxu0 %v337
    %357 = vmatprep.subr.bf16.mxu0 0
    %358 = vmatpush1.bf16.msra.mxu0 %v338
    %359 = vmatprep.subr.bf16.mxu0 0
    %360 = vmatpush1.bf16.msra.mxu0 %v339
    %361 = vmatprep.subr.bf16.mxu0 0
    %362 = vmatpush1.bf16.msra.mxu0 %v340
    %363 = vmatprep.subr.bf16.mxu0 0
    %364 = vmatpush1.bf16.msra.mxu0 %v341
    %365 = vmatprep.subr.bf16.mxu0 0
    %366 = vmatpush1.bf16.msra.mxu0 %v342
    %367 = vmatprep.subr.bf16.mxu0 0
    %368 = vmatpush1.bf16.msra.mxu0 0
    %369 = vmatprep.subr.bf16.mxu0 0
    %370 = vmatpush1.bf16.msra.mxu0 0
    %371 = vmatprep.subr.bf16.mxu0 0
    %372 = vmatpush1.bf16.msra.mxu0 0
    %373 = vmatprep.subr.bf16.mxu0 0
    %374 = vmatpush1.bf16.msra.mxu0 0
    %375 = vmatprep.subr.bf16.mxu0 0
    %376 = vmatpush1.bf16.msra.mxu0 0
    %377 = vmatprep.subr.bf16.mxu0 0
    %378 = vmatpush1.bf16.msra.mxu0 0
    %379 = vmatprep.subr.bf16.mxu0 0
    %380 = vmatpush1.bf16.msra.mxu0 0
    %381 = vmatprep.subr.bf16.mxu0 0
    %382 = vmatpush1.bf16.msra.mxu0 0
    %383 = vmatprep.mubr.bf16.mxu0 0
    %384 = vmatmul.mubr.bf16.gmra.mrb[0].mxu0 %v279
    %v385 = vpop.f32.mrb[0].mxu0
    %v386 = vadd.f32 %v301, %v385
    %v387 = vpop.f32.mrb[0].mxu0
    %v388 = vpop.f32.mrb[0].mxu0
    %v389 = vadd.f32 %v301, %v388
    %v390 = vpop.f32.mrb[0].mxu0
    %391 = vdwg.mxu0
    %v392 = vmax.f32 %v386, 0.0
    %v393 = vmax.f32 %v389, 0.0
    %v394 = vpack.c.bf16 %v393, %v392
    %v395 = vld [vmem:[%s5] sm:$0xf]
    %v396 = vld [vmem:[%s5 + $0x4] sm:$0xf]
    %v397 = vld [vmem:[%s5 + $0x8] sm:$0xf]
    %v398 = vld [vmem:[%s5 + $0xc] sm:$0xf]
    %v399 = vld [vmem:[%s5 + $0x10] sm:$0xf]
    %v400 = vld [vmem:[%s5 + $0x14] sm:$0xf]
    %v401 = vld [vmem:[%s5 + $0x18] sm:$0xf]
    %v402 = vld [vmem:[%s5 + $0x1c] sm:$0xf]
    %v403 = vld [vmem:[%s6] sm:$0x1]
    %v405 = vlaneseq
    %v406 = vshrl.u32 %v405, 7
    %v407 = vsub.s32 0, %v406
    %v408 = vrot.slane %v403, %v407
    %v418 = vunpack.c.l.b16 %v395
    %v419 = vunpack.c.l.b16 %v396
    %v420 = vunpack.c.l.b16 %v397
    %v421 = vunpack.c.l.b16 %v398
    %v422 = vunpack.c.l.b16 %v399
    %v423 = vunpack.c.l.b16 %v400
    %v424 = vunpack.c.l.b16 %v401
    %v425 = vunpack.c.l.b16 %v402
    %v426 = vpack.c.b16 %v419, %v418
    %v427 = vpack.c.b16 %v421, %v420
    %v428 = vpack.c.b16 %v423, %v422
    %v429 = vpack.c.b16 %v425, %v424
    %vm434 = vcmask 523264
    %v436 = vsel %vm434, %v394, 0
    %438 = vmatprep.subr.bf16.mxu0 0
    %439 = vmatpush1.bf16.msra.mxu0 %v426
    %440 = vmatprep.subr.bf16.mxu0 0
    %441 = vmatpush1.bf16.msra.mxu0 %v427
    %442 = vmatprep.subr.bf16.mxu0 0
    %443 = vmatpush1.bf16.msra.mxu0 %v428
    %444 = vmatprep.subr.bf16.mxu0 0
    %445 = vmatpush1.bf16.msra.mxu0 %v429
    %446 = vmatprep.subr.bf16.mxu0 0
    %447 = vmatpush1.bf16.msra.mxu0 0
    %448 = vmatprep.subr.bf16.mxu0 0
    %449 = vmatpush1.bf16.msra.mxu0 0
    %450 = vmatprep.subr.bf16.mxu0 0
    %451 = vmatpush1.bf16.msra.mxu0 0
    %452 = vmatprep.subr.bf16.mxu0 0
    %453 = vmatpush1.bf16.msra.mxu0 0
    %454 = vmatprep.subr.bf16.mxu0 0
    %455 = vmatpush1.bf16.msra.mxu0 0
    %456 = vmatprep.subr.bf16.mxu0 0
    %457 = vmatpush1.bf16.msra.mxu0 0
    %458 = vmatprep.subr.bf16.mxu0 0
    %459 = vmatpush1.bf16.msra.mxu0 0
    %460 = vmatprep.subr.bf16.mxu0 0
    %461 = vmatpush1.bf16.msra.mxu0 0
    %462 = vmatprep.subr.bf16.mxu0 0
    %463 = vmatpush1.bf16.msra.mxu0 0
    %464 = vmatprep.subr.bf16.mxu0 0
    %465 = vmatpush1.bf16.msra.mxu0 0
    %466 = vmatprep.subr.bf16.mxu0 0
    %467 = vmatpush1.bf16.msra.mxu0 0
    %468 = vmatprep.subr.bf16.mxu0 0
    %469 = vmatpush1.bf16.msra.mxu0 0
    %470 = vmatprep.mubr.bf16.mxu0 0
    %471 = vmatmul.mubr.bf16.gmra.mrb[0].mxu0 %v436
    %v472 = vpop.f32.mrb[0].mxu0
    %v473 = vadd.f32 %v408, %v472
    %v474 = vpop.f32.mrb[0].mxu0
    %v475 = vpop.f32.mrb[0].mxu0
    %v476 = vadd.f32 %v408, %v475
    %v477 = vpop.f32.mrb[0].mxu0
    %478 = vdwg.mxu0
    %v479 = vtanh.pop %v473
    %v480 = vtanh.pop %v476
    %481 = vst [vmem:[#allocation2] sm:$0xff] %v479
    %482 = vst [vmem:[#allocation2 + $0x8] sm:$0xff] %v480
    // Predicated region
    $region38: #{tpu_custom_call.1} parent=1 // pred_check
      _
    $region39: #{tpu_custom_call.1} parent=1 // pred_check_branch
      %484 = sbr.rel (0) target = $region41
    $region40: #{tpu_custom_call.1} parent=1 // pred_region
      %s486 = ssub.s32 256, 256
      %487 = vsyncadd [#allocation3], %s486
      %s488 = sshll.u32 [#allocation2], 4
      %s489 = int_to_ptr.vmem [resolvable:$true] %s488
      %494 = dma.vmem_to_hbm [thread:$0]  %s489, 256, %s9, [#allocation3], 128, 128, 8
    $region41: #{tpu_custom_call.1} parent=1 // pred_fallthru
      _
    // Predicated region
    $region42: #{tpu_custom_call.1} parent=1 // pred_check
      _
    $region43: #{tpu_custom_call.1} parent=1 // pred_check_branch
      %496 = sbr.rel (0) target = $region45
    $region44: #{tpu_custom_call.1} parent=1 // pred_region
      %497 = dma.done [#allocation3], 256
    $region45: #{tpu_custom_call.1} parent=1 // pred_fallthru
      _
    %498 = vsyncpa [#allocation3], 1

</llo_original>
